<compile_context>
chip_gen: v5e
topology: v5e:2x2
jax: 0.10.0
libtpu: 0.0.40
codegen_flags: <defaults>
</compile_context>

<pallas_src>
import functools
import math

import jax
import jax.numpy as jnp
from jax.experimental import pallas as pl
from jax.experimental.pallas import tpu as pltpu


# ----------------------------------------------------------------------------
# Pallas kernel: fused  (A_tile @ H) @ W + b  -> optional ReLU
# ----------------------------------------------------------------------------
def _gcn_layer_kernel(a_ref, h_ref, w_ref, b_ref, o_ref, *, relu):
    # a_ref: [TM, Np]  bf16   (rows of the normalized adjacency)
    # h_ref: [Np, Fin] bf16   (node features, VMEM-resident across the grid)
    # w_ref: [Fin, Fout] bf16 (layer weight, VMEM-resident across the grid)
    # b_ref: [1, Fout] f32    (bias)
    agg = jnp.dot(a_ref[...], h_ref[...], preferred_element_type=jnp.float32)
    y = jnp.dot(agg.astype(jnp.bfloat16), w_ref[...],
                preferred_element_type=jnp.float32)
    y = y + b_ref[...]
    if relu:
        y = jnp.maximum(y, 0.0)
    o_ref[...] = y.astype(o_ref.dtype)


def _round_up(x, m):
    return ((x + m - 1) // m) * m


def _pick_row_tile(mp):
    # Largest lane/sublane-friendly row tile that divides the padded node dim.
    for t in (512, 256, 128):
        if mp % t == 0:
            return min(t, mp)
    return mp


def gcn_layer_pallas(a_pad, h_pad, w_pad, b_pad, *, relu, out_dtype):
    """a_pad: [Mp, Np] bf16, h_pad: [Np, Fin] bf16, w_pad: [Fin, Fout] bf16,
    b_pad: [1, Fout] f32.  Returns [Mp, Fout] in out_dtype (kept padded)."""
    Mp, Np = a_pad.shape
    Fin = h_pad.shape[1]
    Fout = w_pad.shape[1]
    TM = _pick_row_tile(Mp)

    kernel = functools.partial(_gcn_layer_kernel, relu=relu)
    return pl.pallas_call(
        kernel,
        out_shape=jax.ShapeDtypeStruct((Mp, Fout), out_dtype),
        grid=(Mp // TM,),
        in_specs=[
            pl.BlockSpec((TM, Np), lambda i: (i, 0)),       # adjacency row tile
            pl.BlockSpec((Np, Fin), lambda i: (0, 0)),      # full H (resident)
            pl.BlockSpec((Fin, Fout), lambda i: (0, 0)),    # weight (resident)
            pl.BlockSpec((1, Fout), lambda i: (0, 0)),      # bias (resident)
        ],
        out_specs=pl.BlockSpec((TM, Fout), lambda i: (i, 0)),
        compiler_params=pltpu.CompilerParams(
            dimension_semantics=("parallel",)),
    )(a_pad, h_pad, w_pad, b_pad)


# ----------------------------------------------------------------------------
# Forward pass: pad once, run every GraphConv layer fused, slice once.
# ----------------------------------------------------------------------------
def gcn_forward(a_hat, x, params):
    n, in_dim = x.shape
    np_ = _round_up(n, 128)

    a_pad = jnp.zeros((np_, np_), jnp.bfloat16)
    a_pad = a_pad.at[:n, :n].set(a_hat.astype(jnp.bfloat16))

    h = jnp.zeros((np_, _round_up(in_dim, 128)), jnp.bfloat16)
    h = h.at[:n, :in_dim].set(x.astype(jnp.bfloat16))

    n_layers = len(params)
    for l, (w, b) in enumerate(params):
        fin, fout = w.shape
        fout_p = _round_up(fout, 128)
        # Weight/bias padding is on closed-over constants -> folded at compile.
        w_pad = jnp.zeros((h.shape[1], fout_p), jnp.bfloat16)
        w_pad = w_pad.at[:fin, :fout].set(w.astype(jnp.bfloat16))
        b_pad = jnp.zeros((1, fout_p), jnp.float32).at[0, :fout].set(b)

        last = (l == n_layers - 1)
        h = gcn_layer_pallas(a_pad, h, w_pad, b_pad,
                             relu=not last,
                             out_dtype=jnp.float32 if last else jnp.bfloat16)

    num_classes = params[-1][0].shape[1]
    return h[:n, :num_classes]          # single slice at the very end


# ----------------------------------------------------------------------------
# Graph preprocessing and deterministic parameters
# ----------------------------------------------------------------------------
def build_normalized_adjacency(src, dst, n):
    """Dense D^-1/2 (A + I) D^-1/2 for an undirected graph with self-loops."""
    a = jnp.zeros((n, n), jnp.float32)
    a = a.at[src, dst].set(1.0)
    a = a.at[dst, src].set(1.0)
    idx = jnp.arange(n)
    a = a.at[idx, idx].set(1.0)                      # dgl.add_self_loop
    deg = a.sum(axis=1)
    dinv = jax.lax.rsqrt(jnp.maximum(deg, 1.0))
    return a * dinv[:, None] * dinv[None, :]


def init_gcn_params(key, in_dim, num_hiddens, num_classes):
    """Glorot-uniform weights (DGL GraphConv init) + small biases."""
    dims = [in_dim] + list(num_hiddens) + [num_classes]
    params = []
    for l in range(len(dims) - 1):
        kw, kb = jax.random.split(jax.random.fold_in(key, l))
        fan_in, fan_out = dims[l], dims[l + 1]
        limit = math.sqrt(6.0 / (fan_in + fan_out))
        w = jax.random.uniform(kw, (fan_in, fan_out), jnp.float32,
                               minval=-limit, maxval=limit)
        b = 0.01 * jax.random.normal(kb, (fan_out,), jnp.float32)
        params.append((w, b))
    return params


def reference_forward(a_hat, x, params):
    """Pure-JAX f32 reference of the same math, for a sanity check."""
    h = x
    for l, (w, b) in enumerate(params):
        h = a_hat @ h @ w + b
        if l != len(params) - 1:
            h = jnp.maximum(h, 0.0)
    return h


# ----------------------------------------------------------------------------
if __name__ == "__main__":
    num_nodes = 200
    num_edges = 800
    in_dim = 16
    num_layers = 2
    num_hiddens = [32, 32]
    num_classes = 4

    key = jax.random.PRNGKey(0)
    k_feat, k_src, k_dst, k_par = jax.random.split(key, 4)

    # Node features (g.ndata['fvs']) and a random undirected edge list.
    x = jax.random.normal(k_feat, (num_nodes, in_dim), jnp.float32)
    src = jax.random.randint(k_src, (num_edges,), 0, num_nodes)
    dst = jax.random.randint(k_dst, (num_edges,), 0, num_nodes)

    a_hat = build_normalized_adjacency(src, dst, num_nodes)
    params = init_gcn_params(k_par, in_dim, num_hiddens, num_classes)

    fwd = jax.jit(lambda a, xx: gcn_forward(a, xx, params))
    logits = jax.block_until_ready(fwd(a_hat, x))

    assert logits.shape == (num_nodes, num_classes), logits.shape
    assert bool(jnp.all(jnp.isfinite(logits)))

    # Loose check against an f32 reference (kernel uses bf16 operands).
    ref = reference_forward(a_hat, x, params)
    assert bool(jnp.allclose(logits, ref, rtol=2e-1, atol=5e-2)), \
        float(jnp.max(jnp.abs(logits - ref)))

    print("KERNEL_OK")
</pallas_src>

<mosaic_0001>
module attributes {stable_mosaic.version = 11 : i64} {
  func.func @_gcn_layer_kernel(%arg0: i32, %arg1: memref<256x256xbf16, #tpu.memory_space<vmem>>, %arg2: memref<256x128xbf16, #tpu.memory_space<vmem>>, %arg3: memref<128x128xbf16, #tpu.memory_space<vmem>>, %arg4: memref<1x128xf32, #tpu.memory_space<vmem>>, %arg5: memref<256x128xf32, #tpu.memory_space<vmem>>) attributes {dimension_semantics = [#tpu.dimension_semantics<parallel>], iteration_bounds = array<i64: 1>, scalar_prefetch = 0 : i64, scratch_operands = 0 : i64, tpu.core_type = #tpu.core_type<tc>, window_params = [{transform_indices = @transform_0, window_bounds = array<i64: 256, 256>}, {pipeline_mode = #tpu.pipeline_mode<synchronous>, transform_indices = @transform_1, window_bounds = array<i64: 256, 128>}, {pipeline_mode = #tpu.pipeline_mode<synchronous>, transform_indices = @transform_2, window_bounds = array<i64: 128, 128>}, {pipeline_mode = #tpu.pipeline_mode<synchronous>, transform_indices = @transform_3, window_bounds = array<i64: 1, 128>}, {transform_indices = @transform_4, window_bounds = array<i64: 256, 128>}]} {
    %c0 = arith.constant 0 : index
    %c0_0 = arith.constant 0 : index
    %0 = vector.load %arg1[%c0, %c0_0] : memref<256x256xbf16, #tpu.memory_space<vmem>>, vector<256x256xbf16>
    %c0_1 = arith.constant 0 : index
    %c0_2 = arith.constant 0 : index
    %1 = vector.load %arg2[%c0_1, %c0_2] : memref<256x128xbf16, #tpu.memory_space<vmem>>, vector<256x128xbf16>
    %cst = arith.constant dense<0.000000e+00> : vector<256x128xf32>
    %2 = tpu.matmul %0, %1, %cst {dimension_numbers = #tpu.dot_dimension_numbers<[1], [0], [0], [1], [0, 0, 1, 1], [], []>} : vector<256x256xbf16>, vector<256x128xbf16>, vector<256x128xf32> -> vector<256x128xf32>
    %3 = arith.truncf %2 : vector<256x128xf32> to vector<256x128xbf16>
    %c0_3 = arith.constant 0 : index
    %c0_4 = arith.constant 0 : index
    %4 = vector.load %arg3[%c0_3, %c0_4] : memref<128x128xbf16, #tpu.memory_space<vmem>>, vector<128x128xbf16>
    %cst_5 = arith.constant dense<0.000000e+00> : vector<256x128xf32>
    %5 = tpu.matmul %3, %4, %cst_5 {dimension_numbers = #tpu.dot_dimension_numbers<[1], [0], [0], [1], [0, 0, 1, 1], [], []>} : vector<256x128xbf16>, vector<128x128xbf16>, vector<256x128xf32> -> vector<256x128xf32>
    %c0_6 = arith.constant 0 : index
    %c0_7 = arith.constant 0 : index
    %6 = vector.load %arg4[%c0_6, %c0_7] : memref<1x128xf32, #tpu.memory_space<vmem>>, vector<1x128xf32>
    %7 = vector.broadcast %6 : vector<1x128xf32> to vector<256x128xf32>
    %8 = arith.addf %5, %7 : vector<256x128xf32>
    %c0_8 = arith.constant 0 : index
    %c0_9 = arith.constant 0 : index
    %9 = vector.load %arg5[%c0_8, %c0_9] : memref<256x128xf32, #tpu.memory_space<vmem>>, vector<256x128xf32>
    tpu.vector_store %arg5[%c0_8, %c0_9], %8 {strides = array<i32>} : memref<256x128xf32, #tpu.memory_space<vmem>>, vector<256x128xf32>,
    return
  }
  func.func @transform_0(%arg0: i32) -> (i32, i32) {
    %c0_i32 = arith.constant 0 : i32
    %c0_i32_0 = arith.constant 0 : i32
    return %arg0, %c0_i32 : i32, i32
  }
  func.func @transform_1(%arg0: i32) -> (i32, i32) {
    %c0_i32 = arith.constant 0 : i32
    %c0_i32_0 = arith.constant 0 : i32
    %c0_i32_1 = arith.constant 0 : i32
    return %c0_i32, %c0_i32_0 : i32, i32
  }
  func.func @transform_2(%arg0: i32) -> (i32, i32) {
    %c0_i32 = arith.constant 0 : i32
    %c0_i32_0 = arith.constant 0 : i32
    %c0_i32_1 = arith.constant 0 : i32
    return %c0_i32, %c0_i32_0 : i32, i32
  }
  func.func @transform_3(%arg0: i32) -> (i32, i32) {
    %c0_i32 = arith.constant 0 : i32
    %c0_i32_0 = arith.constant 0 : i32
    %c0_i32_1 = arith.constant 0 : i32
    return %c0_i32, %c0_i32_0 : i32, i32
  }
  func.func @transform_4(%arg0: i32) -> (i32, i32) {
    %c0_i32 = arith.constant 0 : i32
    %c0_i32_0 = arith.constant 0 : i32
    return %arg0, %c0_i32 : i32, i32
  }
}

module attributes {stable_mosaic.version = 11 : i64} {
  func.func @_gcn_layer_kernel(%arg0: i32, %arg1: memref<256x256xbf16, #tpu.memory_space<vmem>>, %arg2: memref<256x128xbf16, #tpu.memory_space<vmem>>, %arg3: memref<128x128xbf16, #tpu.memory_space<vmem>>, %arg4: memref<1x128xf32, #tpu.memory_space<vmem>>, %arg5: memref<256x128xbf16, #tpu.memory_space<vmem>>) attributes {dimension_semantics = [#tpu.dimension_semantics<parallel>], iteration_bounds = array<i64: 1>, scalar_prefetch = 0 : i64, scratch_operands = 0 : i64, tpu.core_type = #tpu.core_type<tc>, window_params = [{transform_indices = @transform_0, window_bounds = array<i64: 256, 256>}, {pipeline_mode = #tpu.pipeline_mode<synchronous>, transform_indices = @transform_1, window_bounds = array<i64: 256, 128>}, {pipeline_mode = #tpu.pipeline_mode<synchronous>, transform_indices = @transform_2, window_bounds = array<i64: 128, 128>}, {pipeline_mode = #tpu.pipeline_mode<synchronous>, transform_indices = @transform_3, window_bounds = array<i64: 1, 128>}, {transform_indices = @transform_4, window_bounds = array<i64: 256, 128>}]} {
    %c0 = arith.constant 0 : index
    %c0_0 = arith.constant 0 : index
    %0 = vector.load %arg1[%c0, %c0_0] : memref<256x256xbf16, #tpu.memory_space<vmem>>, vector<256x256xbf16>
    %c0_1 = arith.constant 0 : index
    %c0_2 = arith.constant 0 : index
    %1 = vector.load %arg2[%c0_1, %c0_2] : memref<256x128xbf16, #tpu.memory_space<vmem>>, vector<256x128xbf16>
    %cst = arith.constant dense<0.000000e+00> : vector<256x128xf32>
    %2 = tpu.matmul %0, %1, %cst {dimension_numbers = #tpu.dot_dimension_numbers<[1], [0], [0], [1], [0, 0, 1, 1], [], []>} : vector<256x256xbf16>, vector<256x128xbf16>, vector<256x128xf32> -> vector<256x128xf32>
    %3 = arith.truncf %2 : vector<256x128xf32> to vector<256x128xbf16>
    %c0_3 = arith.constant 0 : index
    %c0_4 = arith.constant 0 : index
    %4 = vector.load %arg3[%c0_3, %c0_4] : memref<128x128xbf16, #tpu.memory_space<vmem>>, vector<128x128xbf16>
    %cst_5 = arith.constant dense<0.000000e+00> : vector<256x128xf32>
    %5 = tpu.matmul %3, %4, %cst_5 {dimension_numbers = #tpu.dot_dimension_numbers<[1], [0], [0], [1], [0, 0, 1, 1], [], []>} : vector<256x128xbf16>, vector<128x128xbf16>, vector<256x128xf32> -> vector<256x128xf32>
    %c0_6 = arith.constant 0 : index
    %c0_7 = arith.constant 0 : index
    %6 = vector.load %arg4[%c0_6, %c0_7] : memref<1x128xf32, #tpu.memory_space<vmem>>, vector<1x128xf32>
    %7 = vector.broadcast %6 : vector<1x128xf32> to vector<256x128xf32>
    %8 = arith.addf %5, %7 : vector<256x128xf32>
    %cst_8 = arith.constant 0.000000e+00 : f32
    %9 = vector.broadcast %cst_8 : f32 to vector<256x128xf32>
    %10 = arith.maximumf %8, %9 : vector<256x128xf32>
    %11 = arith.truncf %10 : vector<256x128xf32> to vector<256x128xbf16>
    %c0_9 = arith.constant 0 : index
    %c0_10 = arith.constant 0 : index
    %12 = vector.load %arg5[%c0_9, %c0_10] : memref<256x128xbf16, #tpu.memory_space<vmem>>, vector<256x128xbf16>
    tpu.vector_store %arg5[%c0_9, %c0_10], %11 {strides = array<i32>} : memref<256x128xbf16, #tpu.memory_space<vmem>>, vector<256x128xbf16>,
    return
  }
  func.func @transform_0(%arg0: i32) -> (i32, i32) {
    %c0_i32 = arith.constant 0 : i32
    %c0_i32_0 = arith.constant 0 : i32
    return %arg0, %c0_i32 : i32, i32
  }
  func.func @transform_1(%arg0: i32) -> (i32, i32) {
    %c0_i32 = arith.constant 0 : i32
    %c0_i32_0 = arith.constant 0 : i32
    %c0_i32_1 = arith.constant 0 : i32
    return %c0_i32, %c0_i32_0 : i32, i32
  }
  func.func @transform_2(%arg0: i32) -> (i32, i32) {
    %c0_i32 = arith.constant 0 : i32
    %c0_i32_0 = arith.constant 0 : i32
    %c0_i32_1 = arith.constant 0 : i32
    return %c0_i32, %c0_i32_0 : i32, i32
  }
  func.func @transform_3(%arg0: i32) -> (i32, i32) {
    %c0_i32 = arith.constant 0 : i32
    %c0_i32_0 = arith.constant 0 : i32
    %c0_i32_1 = arith.constant 0 : i32
    return %c0_i32, %c0_i32_0 : i32, i32
  }
  func.func @transform_4(%arg0: i32) -> (i32, i32) {
    %c0_i32 = arith.constant 0 : i32
    %c0_i32_0 = arith.constant 0 : i32
    return %arg0, %c0_i32 : i32, i32
  }
}

</mosaic_0001>

<llo_original>
// kernel: _lambda_.5
$region0: #{_lambda_.5}
  #allocation0 [shape = 'u32[]', space=smem, size = 0x4, offset = 0x4, fixed_abs, tag = 'smem constant byte address 0x4 - core index']
  #allocation1 [shape = 'u32[72,128]{1,0:T(1,128)}', space=vmem, size = 0x9000, scoped, tag = 'internal scratch']
  %s0 = inlined_call_operand.vmem [shape: bf16[256,256], index: 0, kind: input, shape index: {}]
  %s1 = inlined_call_operand.vmem [shape: bf16[256,128], index: 1, kind: input, shape index: {}]
  %s2 = inlined_call_operand.vmem [shape: bf16[128,128], index: 2, kind: input, shape index: {}]
  %s3 = inlined_call_operand.vmem [shape: f32[1,128], index: 3, kind: input, shape index: {}]
  %s4 = inlined_call_operand.vmem [shape: f32[256,128], index: 4, kind: output, shape index: {}]
  %s5 = sld [smem:[#allocation0]]
  $region26: #{_lambda_.5} parent=0
    _
  %s7 = ssub.s32 1, %s5
  %s8 = scalar_select 0, %s7, %s5
  // Predicated region
  $region2: #{_lambda_.5} parent=0 // pred_check
    _
  $region3: #{_lambda_.5} parent=0 // pred_check_branch
    %10 = sbr.rel (0) target = $region5
  $region4: #{_lambda_.5} parent=0 // pred_region
    _
  $region5: #{_lambda_.5} parent=0 // pred_fallthru
    _
  // Predicated region
  $region6: #{_lambda_.5} parent=0 // pred_check
    _
  $region7: #{_lambda_.5} parent=0 // pred_check_branch
    %12 = sbr.rel (0) target = $region9
  $region8: #{_lambda_.5} parent=0 // pred_region
    _
  $region9: #{_lambda_.5} parent=0 // pred_fallthru
    _
  // Predicated region
  $region10: #{_lambda_.5} parent=0 // pred_check
    _
  $region11: #{_lambda_.5} parent=0 // pred_check_branch
    %14 = sbr.rel (0) target = $region13
  $region12: #{_lambda_.5} parent=0 // pred_region
    _
  $region13: #{_lambda_.5} parent=0 // pred_fallthru
    _
  // Predicated region
  $region14: #{_lambda_.5} parent=0 // pred_check
    _
  $region15: #{_lambda_.5} parent=0 // pred_check_branch
    %16 = sbr.rel (0) target = $region17
  $region16: #{_lambda_.5} parent=0 // pred_region
    _
  $region17: #{_lambda_.5} parent=0 // pred_fallthru
    _
  %v17 = vld [vmem:[%s0] sm:$0xff]
  %v18 = vld [vmem:[%s0 + $0x8] sm:$0xff]
  %v19 = vld [vmem:[%s0 + $0x10] sm:$0xff]
  %v20 = vld [vmem:[%s0 + $0x18] sm:$0xff]
  %v21 = vld [vmem:[%s0 + $0x20] sm:$0xff]
  %v22 = vld [vmem:[%s0 + $0x28] sm:$0xff]
  %v23 = vld [vmem:[%s0 + $0x30] sm:$0xff]
  %v24 = vld [vmem:[%s0 + $0x38] sm:$0xff]
  %v25 = vld [vmem:[%s0 + $0x40] sm:$0xff]
  %v26 = vld [vmem:[%s0 + $0x48] sm:$0xff]
  %v27 = vld [vmem:[%s0 + $0x50] sm:$0xff]
  %v28 = vld [vmem:[%s0 + $0x58] sm:$0xff]
  %v29 = vld [vmem:[%s0 + $0x60] sm:$0xff]
  %v30 = vld [vmem:[%s0 + $0x68] sm:$0xff]
  %v31 = vld [vmem:[%s0 + $0x70] sm:$0xff]
  %v32 = vld [vmem:[%s0 + $0x78] sm:$0xff]
  %v33 = vld [vmem:[%s0 + $0x80] sm:$0xff]
  %v34 = vld [vmem:[%s0 + $0x88] sm:$0xff]
  %v35 = vld [vmem:[%s0 + $0x90] sm:$0xff]
  %v36 = vld [vmem:[%s0 + $0x98] sm:$0xff]
  %v37 = vld [vmem:[%s0 + $0xa0] sm:$0xff]
  %v38 = vld [vmem:[%s0 + $0xa8] sm:$0xff]
  %v39 = vld [vmem:[%s0 + $0xb0] sm:$0xff]
  %v40 = vld [vmem:[%s0 + $0xb8] sm:$0xff]
  %v41 = vld [vmem:[%s0 + $0xc0] sm:$0xff]
  %v42 = vld [vmem:[%s0 + $0xc8] sm:$0xff]
  %v43 = vld [vmem:[%s0 + $0xd0] sm:$0xff]
  %v44 = vld [vmem:[%s0 + $0xd8] sm:$0xff]
  %v45 = vld [vmem:[%s0 + $0xe0] sm:$0xff]
  %v46 = vld [vmem:[%s0 + $0xe8] sm:$0xff]
  %v47 = vld [vmem:[%s0 + $0xf0] sm:$0xff]
  %v48 = vld [vmem:[%s0 + $0xf8] sm:$0xff]
  %v49 = vld [vmem:[%s1] sm:$0xf]
  %v50 = vld [vmem:[%s1 + $0x4] sm:$0xf]
  %v51 = vld [vmem:[%s1 + $0x8] sm:$0xf]
  %v52 = vld [vmem:[%s1 + $0xc] sm:$0xf]
  %v53 = vld [vmem:[%s1 + $0x10] sm:$0xf]
  %v54 = vld [vmem:[%s1 + $0x14] sm:$0xf]
  %v55 = vld [vmem:[%s1 + $0x18] sm:$0xf]
  %v56 = vld [vmem:[%s1 + $0x1c] sm:$0xf]
  %v57 = vld [vmem:[%s1 + $0x20] sm:$0xf]
  %v58 = vld [vmem:[%s1 + $0x24] sm:$0xf]
  %v59 = vld [vmem:[%s1 + $0x28] sm:$0xf]
  %v60 = vld [vmem:[%s1 + $0x2c] sm:$0xf]
  %v61 = vld [vmem:[%s1 + $0x30] sm:$0xf]
  %v62 = vld [vmem:[%s1 + $0x34] sm:$0xf]
  %v63 = vld [vmem:[%s1 + $0x38] sm:$0xf]
  %v64 = vld [vmem:[%s1 + $0x3c] sm:$0xf]
  %v65 = vld [vmem:[%s1 + $0x40] sm:$0xf]
  %v66 = vld [vmem:[%s1 + $0x44] sm:$0xf]
  %v67 = vld [vmem:[%s1 + $0x48] sm:$0xf]
  %v68 = vld [vmem:[%s1 + $0x4c] sm:$0xf]
  %v69 = vld [vmem:[%s1 + $0x50] sm:$0xf]
  %v70 = vld [vmem:[%s1 + $0x54] sm:$0xf]
  %v71 = vld [vmem:[%s1 + $0x58] sm:$0xf]
  %v72 = vld [vmem:[%s1 + $0x5c] sm:$0xf]
  %v73 = vld [vmem:[%s1 + $0x60] sm:$0xf]
  %v74 = vld [vmem:[%s1 + $0x64] sm:$0xf]
  %v75 = vld [vmem:[%s1 + $0x68] sm:$0xf]
  %v76 = vld [vmem:[%s1 + $0x6c] sm:$0xf]
  %v77 = vld [vmem:[%s1 + $0x70] sm:$0xf]
  %v78 = vld [vmem:[%s1 + $0x74] sm:$0xf]
  %v79 = vld [vmem:[%s1 + $0x78] sm:$0xf]
  %v80 = vld [vmem:[%s1 + $0x7c] sm:$0xf]
  %v113 = vunpack.c.l.b16 %v17
  %v114 = vunpack.c.h.b16 %v17
  %v115 = vunpack.c.l.b16 %v18
  %v116 = vunpack.c.h.b16 %v18
  %v117 = vunpack.c.l.b16 %v19
  %v118 = vunpack.c.h.b16 %v19
  %v119 = vunpack.c.l.b16 %v20
  %v120 = vunpack.c.h.b16 %v20
  %v121 = vunpack.c.l.b16 %v21
  %v122 = vunpack.c.h.b16 %v21
  %v123 = vunpack.c.l.b16 %v22
  %v124 = vunpack.c.h.b16 %v22
  %v125 = vunpack.c.l.b16 %v23
  %v126 = vunpack.c.h.b16 %v23
  %v127 = vunpack.c.l.b16 %v24
  %v128 = vunpack.c.h.b16 %v24
  %v129 = vunpack.c.l.b16 %v25
  %v130 = vunpack.c.h.b16 %v25
  %v131 = vunpack.c.l.b16 %v26
  %v132 = vunpack.c.h.b16 %v26
  %v133 = vunpack.c.l.b16 %v27
  %v134 = vunpack.c.h.b16 %v27
  %v135 = vunpack.c.l.b16 %v28
  %v136 = vunpack.c.h.b16 %v28
  %v137 = vunpack.c.l.b16 %v29
  %v138 = vunpack.c.h.b16 %v29
  %v139 = vunpack.c.l.b16 %v30
  %v140 = vunpack.c.h.b16 %v30
  %v141 = vunpack.c.l.b16 %v31
  %v142 = vunpack.c.h.b16 %v31
  %v143 = vunpack.c.l.b16 %v32
  %v144 = vunpack.c.h.b16 %v32
  %v145 = vunpack.c.l.b16 %v33
  %v146 = vunpack.c.h.b16 %v33
  %v147 = vunpack.c.l.b16 %v34
  %v148 = vunpack.c.h.b16 %v34
  %v149 = vunpack.c.l.b16 %v35
  %v150 = vunpack.c.h.b16 %v35
  %v151 = vunpack.c.l.b16 %v36
  %v152 = vunpack.c.h.b16 %v36
  %v153 = vunpack.c.l.b16 %v37
  %v154 = vunpack.c.h.b16 %v37
  %v155 = vunpack.c.l.b16 %v38
  %v156 = vunpack.c.h.b16 %v38
  %v157 = vunpack.c.l.b16 %v39
  %v158 = vunpack.c.h.b16 %v39
  %v159 = vunpack.c.l.b16 %v40
  %v160 = vunpack.c.h.b16 %v40
  %v161 = vunpack.c.l.b16 %v41
  %v162 = vunpack.c.h.b16 %v41
  %v163 = vunpack.c.l.b16 %v42
  %v164 = vunpack.c.h.b16 %v42
  %v165 = vunpack.c.l.b16 %v43
  %v166 = vunpack.c.h.b16 %v43
  %v167 = vunpack.c.l.b16 %v44
  %v168 = vunpack.c.h.b16 %v44
  %v169 = vunpack.c.l.b16 %v45
  %v170 = vunpack.c.h.b16 %v45
  %v171 = vunpack.c.l.b16 %v46
  %v172 = vunpack.c.h.b16 %v46
  %v173 = vunpack.c.l.b16 %v47
  %v174 = vunpack.c.h.b16 %v47
  %v175 = vunpack.c.l.b16 %v48
  %v176 = vunpack.c.h.b16 %v48
  %v177 = vpack.c.b16 %v115, %v113
  %v178 = vpack.c.b16 %v116, %v114
  %v179 = vpack.c.b16 %v119, %v117
  %v180 = vpack.c.b16 %v120, %v118
  %v181 = vpack.c.b16 %v123, %v121
  %v182 = vpack.c.b16 %v124, %v122
  %v183 = vpack.c.b16 %v127, %v125
  %v184 = vpack.c.b16 %v128, %v126
  %v185 = vpack.c.b16 %v131, %v129
  %v186 = vpack.c.b16 %v132, %v130
  %v187 = vpack.c.b16 %v135, %v133
  %v188 = vpack.c.b16 %v136, %v134
  %v189 = vpack.c.b16 %v139, %v137
  %v190 = vpack.c.b16 %v140, %v138
  %v191 = vpack.c.b16 %v143, %v141
  %v192 = vpack.c.b16 %v144, %v142
  %v193 = vpack.c.b16 %v147, %v145
  %v194 = vpack.c.b16 %v148, %v146
  %v195 = vpack.c.b16 %v151, %v149
  %v196 = vpack.c.b16 %v152, %v150
  %v197 = vpack.c.b16 %v155, %v153
  %v198 = vpack.c.b16 %v156, %v154
  %v199 = vpack.c.b16 %v159, %v157
  %v200 = vpack.c.b16 %v160, %v158
  %v201 = vpack.c.b16 %v163, %v161
  %v202 = vpack.c.b16 %v164, %v162
  %v203 = vpack.c.b16 %v167, %v165
  %v204 = vpack.c.b16 %v168, %v166
  %v205 = vpack.c.b16 %v171, %v169
  %v206 = vpack.c.b16 %v172, %v170
  %v207 = vpack.c.b16 %v175, %v173
  %v208 = vpack.c.b16 %v176, %v174
  %v273 = vunpack.c.l.b16 %v49
  %v274 = vunpack.c.l.b16 %v50
  %v275 = vunpack.c.l.b16 %v51
  %v276 = vunpack.c.l.b16 %v52
  %v277 = vunpack.c.l.b16 %v53
  %v278 = vunpack.c.l.b16 %v54
  %v279 = vunpack.c.l.b16 %v55
  %v280 = vunpack.c.l.b16 %v56
  %v281 = vunpack.c.l.b16 %v57
  %v282 = vunpack.c.l.b16 %v58
  %v283 = vunpack.c.l.b16 %v59
  %v284 = vunpack.c.l.b16 %v60
  %v285 = vunpack.c.l.b16 %v61
  %v286 = vunpack.c.l.b16 %v62
  %v287 = vunpack.c.l.b16 %v63
  %v288 = vunpack.c.l.b16 %v64
  %v289 = vunpack.c.l.b16 %v65
  %v290 = vunpack.c.l.b16 %v66
  %v291 = vunpack.c.l.b16 %v67
  %v292 = vunpack.c.l.b16 %v68
  %v293 = vunpack.c.l.b16 %v69
  %v294 = vunpack.c.l.b16 %v70
  %v295 = vunpack.c.l.b16 %v71
  %v296 = vunpack.c.l.b16 %v72
  %v297 = vunpack.c.l.b16 %v73
  %v298 = vunpack.c.l.b16 %v74
  %v299 = vunpack.c.l.b16 %v75
  %v300 = vunpack.c.l.b16 %v76
  %v301 = vunpack.c.l.b16 %v77
  %v302 = vunpack.c.l.b16 %v78
  %v303 = vunpack.c.l.b16 %v79
  %v304 = vunpack.c.l.b16 %v80
  %v305 = vpack.c.b16 %v274, %v273
  %v306 = vpack.c.b16 %v276, %v275
  %v307 = vpack.c.b16 %v278, %v277
  %v308 = vpack.c.b16 %v280, %v279
  %v309 = vpack.c.b16 %v282, %v281
  %v310 = vpack.c.b16 %v284, %v283
  %v311 = vpack.c.b16 %v286, %v285
  %v312 = vpack.c.b16 %v288, %v287
  %v313 = vpack.c.b16 %v290, %v289
  %v314 = vpack.c.b16 %v292, %v291
  %v315 = vpack.c.b16 %v294, %v293
  %v316 = vpack.c.b16 %v296, %v295
  %v317 = vpack.c.b16 %v298, %v297
  %v318 = vpack.c.b16 %v300, %v299
  %v319 = vpack.c.b16 %v302, %v301
  %v320 = vpack.c.b16 %v304, %v303
  %337 = vmatpush.bf16.msra.mxu0 %v312
  %338 = vmatpush.bf16.msra.mxu0 %v311
  %339 = vmatpush.bf16.msra.mxu0 %v310
  %340 = vmatpush.bf16.msra.mxu0 %v309
  %341 = vmatpush.bf16.msra.mxu0 %v308
  %342 = vmatpush.bf16.msra.mxu0 %v307
  %343 = vmatpush.bf16.msra.mxu0 %v306
  %344 = vmatpush.bf16.msra.mxu0 %v305
  %345 = vmatmul.bf16.gmra.mxu0 %v177
  %v346 = vpop.f32.mrf.mxu0
  %v347 = vadd.f32 0.0, %v346
  %v348 = vpop.f32.mrf.mxu0
  %v349 = vadd.f32 0.0, %v348
  %350 = vmatmul.bf16.gmra.mxu0 %v179
  %v351 = vpop.f32.mrf.mxu0
  %v352 = vadd.f32 0.0, %v351
  %v353 = vpop.f32.mrf.mxu0
  %v354 = vadd.f32 0.0, %v353
  %355 = vmatmul.bf16.gmra.mxu0 %v181
  %v356 = vpop.f32.mrf.mxu0
  %v357 = vadd.f32 0.0, %v356
  %v358 = vpop.f32.mrf.mxu0
  %v359 = vadd.f32 0.0, %v358
  %360 = vmatmul.bf16.gmra.mxu0 %v183
  %v361 = vpop.f32.mrf.mxu0
  %v362 = vadd.f32 0.0, %v361
  %v363 = vpop.f32.mrf.mxu0
  %v364 = vadd.f32 0.0, %v363
  %365 = vmatmul.bf16.gmra.mxu0 %v185
  %v366 = vpop.f32.mrf.mxu0
  %v367 = vadd.f32 0.0, %v366
  %v368 = vpop.f32.mrf.mxu0
  %v369 = vadd.f32 0.0, %v368
  %370 = vmatmul.bf16.gmra.mxu0 %v187
  %v371 = vpop.f32.mrf.mxu0
  %v372 = vadd.f32 0.0, %v371
  %v373 = vpop.f32.mrf.mxu0
  %v374 = vadd.f32 0.0, %v373
  %375 = vmatmul.bf16.gmra.mxu0 %v189
  %v376 = vpop.f32.mrf.mxu0
  %v377 = vadd.f32 0.0, %v376
  %v378 = vpop.f32.mrf.mxu0
  %v379 = vadd.f32 0.0, %v378
  %380 = vmatmul.bf16.gmra.mxu0 %v191
  %v381 = vpop.f32.mrf.mxu0
  %v382 = vadd.f32 0.0, %v381
  %v383 = vpop.f32.mrf.mxu0
  %v384 = vadd.f32 0.0, %v383
  %385 = vmatmul.bf16.gmra.mxu0 %v193
  %v386 = vpop.f32.mrf.mxu0
  %v387 = vadd.f32 0.0, %v386
  %v388 = vpop.f32.mrf.mxu0
  %v389 = vadd.f32 0.0, %v388
  %390 = vmatmul.bf16.gmra.mxu0 %v195
  %v391 = vpop.f32.mrf.mxu0
  %v392 = vadd.f32 0.0, %v391
  %v393 = vpop.f32.mrf.mxu0
  %v394 = vadd.f32 0.0, %v393
  %395 = vmatmul.bf16.gmra.mxu0 %v197
  %v396 = vpop.f32.mrf.mxu0
  %v397 = vadd.f32 0.0, %v396
  %v398 = vpop.f32.mrf.mxu0
  %v399 = vadd.f32 0.0, %v398
  %400 = vmatmul.bf16.gmra.mxu0 %v199
  %v401 = vpop.f32.mrf.mxu0
  %v402 = vadd.f32 0.0, %v401
  %v403 = vpop.f32.mrf.mxu0
  %v404 = vadd.f32 0.0, %v403
  %405 = vmatmul.bf16.gmra.mxu0 %v201
  %v406 = vpop.f32.mrf.mxu0
  %v407 = vadd.f32 0.0, %v406
  %v408 = vpop.f32.mrf.mxu0
  %v409 = vadd.f32 0.0, %v408
  %410 = vmatmul.bf16.gmra.mxu0 %v203
  %v411 = vpop.f32.mrf.mxu0
  %v412 = vadd.f32 0.0, %v411
  %v413 = vpop.f32.mrf.mxu0
  %v414 = vadd.f32 0.0, %v413
  %415 = vmatmul.bf16.gmra.mxu0 %v205
  %v416 = vpop.f32.mrf.mxu0
  %v417 = vadd.f32 0.0, %v416
  %v418 = vpop.f32.mrf.mxu0
  %v419 = vadd.f32 0.0, %v418
  %420 = vmatmul.bf16.gmra.mxu0 %v207
  %v421 = vpop.f32.mrf.mxu0
  %v422 = vadd.f32 0.0, %v421
  %v423 = vpop.f32.mrf.mxu0
  %v424 = vadd.f32 0.0, %v423
  %425 = vdwg.mxu0
  %426 = vmatpush.bf16.msra.mxu0 %v320
  %427 = vmatpush.bf16.msra.mxu0 %v319
  %428 = vmatpush.bf16.msra.mxu0 %v318
  %429 = vmatpush.bf16.msra.mxu0 %v317
  %430 = vmatpush.bf16.msra.mxu0 %v316
  %431 = vmatpush.bf16.msra.mxu0 %v315
  %432 = vmatpush.bf16.msra.mxu0 %v314
  %433 = vmatpush.bf16.msra.mxu0 %v313
  %434 = vmatmul.bf16.gmra.mxu0 %v178
  %v435 = vpop.f32.mrf.mxu0
  %v436 = vadd.f32 %v347, %v435
  %v437 = vpop.f32.mrf.mxu0
  %v438 = vadd.f32 %v349, %v437
  %439 = vmatmul.bf16.gmra.mxu0 %v180
  %v440 = vpop.f32.mrf.mxu0
  %v441 = vadd.f32 %v352, %v440
  %v442 = vpop.f32.mrf.mxu0
  %v443 = vadd.f32 %v354, %v442
  %444 = vmatmul.bf16.gmra.mxu0 %v182
  %v445 = vpop.f32.mrf.mxu0
  %v446 = vadd.f32 %v357, %v445
  %v447 = vpop.f32.mrf.mxu0
  %v448 = vadd.f32 %v359, %v447
  %449 = vmatmul.bf16.gmra.mxu0 %v184
  %v450 = vpop.f32.mrf.mxu0
  %v451 = vadd.f32 %v362, %v450
  %v452 = vpop.f32.mrf.mxu0
  %v453 = vadd.f32 %v364, %v452
  %454 = vmatmul.bf16.gmra.mxu0 %v186
  %v455 = vpop.f32.mrf.mxu0
  %v456 = vadd.f32 %v367, %v455
  %v457 = vpop.f32.mrf.mxu0
  %v458 = vadd.f32 %v369, %v457
  %459 = vmatmul.bf16.gmra.mxu0 %v188
  %v460 = vpop.f32.mrf.mxu0
  %v461 = vadd.f32 %v372, %v460
  %v462 = vpop.f32.mrf.mxu0
  %v463 = vadd.f32 %v374, %v462
  %464 = vmatmul.bf16.gmra.mxu0 %v190
  %v465 = vpop.f32.mrf.mxu0
  %v466 = vadd.f32 %v377, %v465
  %v467 = vpop.f32.mrf.mxu0
  %v468 = vadd.f32 %v379, %v467
  %469 = vmatmul.bf16.gmra.mxu0 %v192
  %v470 = vpop.f32.mrf.mxu0
  %v471 = vadd.f32 %v382, %v470
  %v472 = vpop.f32.mrf.mxu0
  %v473 = vadd.f32 %v384, %v472
  %474 = vmatmul.bf16.gmra.mxu0 %v194
  %v475 = vpop.f32.mrf.mxu0
  %v476 = vadd.f32 %v387, %v475
  %v477 = vpop.f32.mrf.mxu0
  %v478 = vadd.f32 %v389, %v477
  %479 = vmatmul.bf16.gmra.mxu0 %v196
  %v480 = vpop.f32.mrf.mxu0
  %v481 = vadd.f32 %v392, %v480
  %v482 = vpop.f32.mrf.mxu0
  %v483 = vadd.f32 %v394, %v482
  %484 = vmatmul.bf16.gmra.mxu0 %v198
  %v485 = vpop.f32.mrf.mxu0
  %v486 = vadd.f32 %v397, %v485
  %v487 = vpop.f32.mrf.mxu0
  %v488 = vadd.f32 %v399, %v487
  %489 = vmatmul.bf16.gmra.mxu0 %v200
  %v490 = vpop.f32.mrf.mxu0
  %v491 = vadd.f32 %v402, %v490
  %v492 = vpop.f32.mrf.mxu0
  %v493 = vadd.f32 %v404, %v492
  %494 = vmatmul.bf16.gmra.mxu0 %v202
  %v495 = vpop.f32.mrf.mxu0
  %v496 = vadd.f32 %v407, %v495
  %v497 = vpop.f32.mrf.mxu0
  %v498 = vadd.f32 %v409, %v497
  %499 = vmatmul.bf16.gmra.mxu0 %v204
  %v500 = vpop.f32.mrf.mxu0
  %v501 = vadd.f32 %v412, %v500
  %v502 = vpop.f32.mrf.mxu0
  %v503 = vadd.f32 %v414, %v502
  %504 = vmatmul.bf16.gmra.mxu0 %v206
  %v505 = vpop.f32.mrf.mxu0
  %v506 = vadd.f32 %v417, %v505
  %v507 = vpop.f32.mrf.mxu0
  %v508 = vadd.f32 %v419, %v507
  %509 = vmatmul.bf16.gmra.mxu0 %v208
  %v510 = vpop.f32.mrf.mxu0
  %v511 = vadd.f32 %v422, %v510
  %v512 = vpop.f32.mrf.mxu0
  %v513 = vadd.f32 %v424, %v512
  %514 = vdwg.mxu0
  %v515 = vpack.c.bf16 %v438, %v436
  %v516 = vpack.c.bf16 %v443, %v441
  %v517 = vpack.c.bf16 %v448, %v446
  %v518 = vpack.c.bf16 %v453, %v451
  %v519 = vpack.c.bf16 %v458, %v456
  %v520 = vpack.c.bf16 %v463, %v461
  %v521 = vpack.c.bf16 %v468, %v466
  %v522 = vpack.c.bf16 %v473, %v471
  %v523 = vpack.c.bf16 %v478, %v476
  %v524 = vpack.c.bf16 %v483, %v481
  %v525 = vpack.c.bf16 %v488, %v486
  %v526 = vpack.c.bf16 %v493, %v491
  %v527 = vpack.c.bf16 %v498, %v496
  %v528 = vpack.c.bf16 %v503, %v501
  %v529 = vpack.c.bf16 %v508, %v506
  %v530 = vpack.c.bf16 %v513, %v511
  %v531 = vld [vmem:[%s2] sm:$0xf]
  %v532 = vld [vmem:[%s2 + $0x4] sm:$0xf]
  %v533 = vld [vmem:[%s2 + $0x8] sm:$0xf]
  %v534 = vld [vmem:[%s2 + $0xc] sm:$0xf]
  %v535 = vld [vmem:[%s2 + $0x10] sm:$0xf]
  %v536 = vld [vmem:[%s2 + $0x14] sm:$0xf]
  %v537 = vld [vmem:[%s2 + $0x18] sm:$0xf]
  %v538 = vld [vmem:[%s2 + $0x1c] sm:$0xf]
  %v539 = vld [vmem:[%s2 + $0x20] sm:$0xf]
  %v540 = vld [vmem:[%s2 + $0x24] sm:$0xf]
  %v541 = vld [vmem:[%s2 + $0x28] sm:$0xf]
  %v542 = vld [vmem:[%s2 + $0x2c] sm:$0xf]
  %v543 = vld [vmem:[%s2 + $0x30] sm:$0xf]
  %v544 = vld [vmem:[%s2 + $0x34] sm:$0xf]
  %v545 = vld [vmem:[%s2 + $0x38] sm:$0xf]
  %v546 = vld [vmem:[%s2 + $0x3c] sm:$0xf]
  %v547 = vld [vmem:[%s3] sm:$0x1]
  %v549 = vperm.slane %v547, 0
  %v567 = vunpack.c.l.b16 %v531
  %v568 = vunpack.c.l.b16 %v532
  %v569 = vunpack.c.l.b16 %v533
  %v570 = vunpack.c.l.b16 %v534
  %v571 = vunpack.c.l.b16 %v535
  %v572 = vunpack.c.l.b16 %v536
  %v573 = vunpack.c.l.b16 %v537
  %v574 = vunpack.c.l.b16 %v538
  %v575 = vunpack.c.l.b16 %v539
  %v576 = vunpack.c.l.b16 %v540
  %v577 = vunpack.c.l.b16 %v541
  %v578 = vunpack.c.l.b16 %v542
  %v579 = vunpack.c.l.b16 %v543
  %v580 = vunpack.c.l.b16 %v544
  %v581 = vunpack.c.l.b16 %v545
  %v582 = vunpack.c.l.b16 %v546
  %v583 = vpack.c.b16 %v568, %v567
  %v584 = vpack.c.b16 %v570, %v569
  %v585 = vpack.c.b16 %v572, %v571
  %v586 = vpack.c.b16 %v574, %v573
  %v587 = vpack.c.b16 %v576, %v575
  %v588 = vpack.c.b16 %v578, %v577
  %v589 = vpack.c.b16 %v580, %v579
  %v590 = vpack.c.b16 %v582, %v581
  %599 = vmatpush.bf16.msra.mxu0 %v590
  %600 = vmatpush.bf16.msra.mxu0 %v589
  %601 = vmatpush.bf16.msra.mxu0 %v588
  %602 = vmatpush.bf16.msra.mxu0 %v587
  %603 = vmatpush.bf16.msra.mxu0 %v586
  %604 = vmatpush.bf16.msra.mxu0 %v585
  %605 = vmatpush.bf16.msra.mxu0 %v584
  %606 = vmatpush.bf16.msra.mxu0 %v583
  %607 = vmatmul.bf16.gmra.mxu0 %v515
  %v608 = vpop.f32.mrf.mxu0
  %v609 = vadd.f32 %v549, %v608
  %v610 = vpop.f32.mrf.mxu0
  %v611 = vadd.f32 %v549, %v610
  %612 = vmatmul.bf16.gmra.mxu0 %v516
  %v613 = vpop.f32.mrf.mxu0
  %v614 = vadd.f32 %v549, %v613
  %v615 = vpop.f32.mrf.mxu0
  %v616 = vadd.f32 %v549, %v615
  %617 = vmatmul.bf16.gmra.mxu0 %v517
  %v618 = vpop.f32.mrf.mxu0
  %v619 = vadd.f32 %v549, %v618
  %v620 = vpop.f32.mrf.mxu0
  %v621 = vadd.f32 %v549, %v620
  %622 = vmatmul.bf16.gmra.mxu0 %v518
  %v623 = vpop.f32.mrf.mxu0
  %v624 = vadd.f32 %v549, %v623
  %v625 = vpop.f32.mrf.mxu0
  %v626 = vadd.f32 %v549, %v625
  %627 = vmatmul.bf16.gmra.mxu0 %v519
  %v628 = vpop.f32.mrf.mxu0
  %v629 = vadd.f32 %v549, %v628
  %v630 = vpop.f32.mrf.mxu0
  %v631 = vadd.f32 %v549, %v630
  %632 = vmatmul.bf16.gmra.mxu0 %v520
  %v633 = vpop.f32.mrf.mxu0
  %v634 = vadd.f32 %v549, %v633
  %v635 = vpop.f32.mrf.mxu0
  %v636 = vadd.f32 %v549, %v635
  %637 = vmatmul.bf16.gmra.mxu0 %v521
  %v638 = vpop.f32.mrf.mxu0
  %v639 = vadd.f32 %v549, %v638
  %v640 = vpop.f32.mrf.mxu0
  %v641 = vadd.f32 %v549, %v640
  %642 = vmatmul.bf16.gmra.mxu0 %v522
  %v643 = vpop.f32.mrf.mxu0
  %v644 = vadd.f32 %v549, %v643
  %v645 = vpop.f32.mrf.mxu0
  %v646 = vadd.f32 %v549, %v645
  %647 = vmatmul.bf16.gmra.mxu0 %v523
  %v648 = vpop.f32.mrf.mxu0
  %v649 = vadd.f32 %v549, %v648
  %v650 = vpop.f32.mrf.mxu0
  %v651 = vadd.f32 %v549, %v650
  %652 = vmatmul.bf16.gmra.mxu0 %v524
  %v653 = vpop.f32.mrf.mxu0
  %v654 = vadd.f32 %v549, %v653
  %v655 = vpop.f32.mrf.mxu0
  %v656 = vadd.f32 %v549, %v655
  %657 = vmatmul.bf16.gmra.mxu0 %v525
  %v658 = vpop.f32.mrf.mxu0
  %v659 = vadd.f32 %v549, %v658
  %v660 = vpop.f32.mrf.mxu0
  %v661 = vadd.f32 %v549, %v660
  %662 = vmatmul.bf16.gmra.mxu0 %v526
  %v663 = vpop.f32.mrf.mxu0
  %v664 = vadd.f32 %v549, %v663
  %v665 = vpop.f32.mrf.mxu0
  %v666 = vadd.f32 %v549, %v665
  %667 = vmatmul.bf16.gmra.mxu0 %v527
  %v668 = vpop.f32.mrf.mxu0
  %v669 = vadd.f32 %v549, %v668
  %v670 = vpop.f32.mrf.mxu0
  %v671 = vadd.f32 %v549, %v670
  %672 = vmatmul.bf16.gmra.mxu0 %v528
  %v673 = vpop.f32.mrf.mxu0
  %v674 = vadd.f32 %v549, %v673
  %v675 = vpop.f32.mrf.mxu0
  %v676 = vadd.f32 %v549, %v675
  %677 = vmatmul.bf16.gmra.mxu0 %v529
  %v678 = vpop.f32.mrf.mxu0
  %v679 = vadd.f32 %v549, %v678
  %v680 = vpop.f32.mrf.mxu0
  %v681 = vadd.f32 %v549, %v680
  %682 = vmatmul.bf16.gmra.mxu0 %v530
  %v683 = vpop.f32.mrf.mxu0
  %v684 = vadd.f32 %v549, %v683
  %v685 = vpop.f32.mrf.mxu0
  %v686 = vadd.f32 %v549, %v685
  %687 = vdwg.mxu0
  %688 = vst [vmem:[%s4] sm:$0xff] %v609
  %689 = vst [vmem:[%s4 + $0x8] sm:$0xff] %v611
  %690 = vst [vmem:[%s4 + $0x10] sm:$0xff] %v614
  %691 = vst [vmem:[%s4 + $0x18] sm:$0xff] %v616
  %692 = vst [vmem:[%s4 + $0x20] sm:$0xff] %v619
  %693 = vst [vmem:[%s4 + $0x28] sm:$0xff] %v621
  %694 = vst [vmem:[%s4 + $0x30] sm:$0xff] %v624
  %695 = vst [vmem:[%s4 + $0x38] sm:$0xff] %v626
  %696 = vst [vmem:[%s4 + $0x40] sm:$0xff] %v629
  %697 = vst [vmem:[%s4 + $0x48] sm:$0xff] %v631
  %698 = vst [vmem:[%s4 + $0x50] sm:$0xff] %v634
  %699 = vst [vmem:[%s4 + $0x58] sm:$0xff] %v636
  %700 = vst [vmem:[%s4 + $0x60] sm:$0xff] %v639
  %701 = vst [vmem:[%s4 + $0x68] sm:$0xff] %v641
  %702 = vst [vmem:[%s4 + $0x70] sm:$0xff] %v644
  %703 = vst [vmem:[%s4 + $0x78] sm:$0xff] %v646
  %704 = vst [vmem:[%s4 + $0x80] sm:$0xff] %v649
  %705 = vst [vmem:[%s4 + $0x88] sm:$0xff] %v651
  %706 = vst [vmem:[%s4 + $0x90] sm:$0xff] %v654
  %707 = vst [vmem:[%s4 + $0x98] sm:$0xff] %v656
  %708 = vst [vmem:[%s4 + $0xa0] sm:$0xff] %v659
  %709 = vst [vmem:[%s4 + $0xa8] sm:$0xff] %v661
  %710 = vst [vmem:[%s4 + $0xb0] sm:$0xff] %v664
  %711 = vst [vmem:[%s4 + $0xb8] sm:$0xff] %v666
  %712 = vst [vmem:[%s4 + $0xc0] sm:$0xff] %v669
  %713 = vst [vmem:[%s4 + $0xc8] sm:$0xff] %v671
  %714 = vst [vmem:[%s4 + $0xd0] sm:$0xff] %v674
  %715 = vst [vmem:[%s4 + $0xd8] sm:$0xff] %v676
  %716 = vst [vmem:[%s4 + $0xe0] sm:$0xff] %v679
  %717 = vst [vmem:[%s4 + $0xe8] sm:$0xff] %v681
  %718 = vst [vmem:[%s4 + $0xf0] sm:$0xff] %v684
  %719 = vst [vmem:[%s4 + $0xf8] sm:$0xff] %v686
  // Predicated region
  $region18: #{_lambda_.5} parent=0 // pred_check
    _
  $region19: #{_lambda_.5} parent=0 // pred_check_branch
    %721 = sbr.rel (0) target = $region21
  $region20: #{_lambda_.5} parent=0 // pred_region
    _
  $region21: #{_lambda_.5} parent=0 // pred_fallthru
    _
  // Predicated region
  $region22: #{_lambda_.5} parent=0 // pred_check
    _
  $region23: #{_lambda_.5} parent=0 // pred_check_branch
    %723 = sbr.rel (0) target = $region25
  $region24: #{_lambda_.5} parent=0 // pred_region
    _
  $region25: #{_lambda_.5} parent=0 // pred_fallthru
    _

// kernel: _lambda_.3
$region0: #{_lambda_.3}
  #allocation0 [shape = 'u32[]', space=smem, size = 0x4, offset = 0x4, fixed_abs, tag = 'smem constant byte address 0x4 - core index']
  #allocation1 [shape = 'u32[72,128]{1,0:T(1,128)}', space=vmem, size = 0x9000, scoped, tag = 'internal scratch']
  %s0 = inlined_call_operand.vmem [shape: bf16[256,256], index: 0, kind: input, shape index: {}]
  %s1 = inlined_call_operand.vmem [shape: bf16[256,128], index: 1, kind: input, shape index: {}]
  %s2 = inlined_call_operand.vmem [shape: bf16[128,128], index: 2, kind: input, shape index: {}]
  %s3 = inlined_call_operand.vmem [shape: f32[1,128], index: 3, kind: input, shape index: {}]
  %s4 = inlined_call_operand.vmem [shape: bf16[256,128], index: 4, kind: output, shape index: {}]
  %s5 = sld [smem:[#allocation0]]
  $region26: #{_lambda_.3} parent=0
    _
  %s7 = ssub.s32 1, %s5
  %s8 = scalar_select 0, %s7, %s5
  // Predicated region
  $region2: #{_lambda_.3} parent=0 // pred_check
    _
  $region3: #{_lambda_.3} parent=0 // pred_check_branch
    %10 = sbr.rel (0) target = $region5
  $region4: #{_lambda_.3} parent=0 // pred_region
    _
  $region5: #{_lambda_.3} parent=0 // pred_fallthru
    _
  // Predicated region
  $region6: #{_lambda_.3} parent=0 // pred_check
    _
  $region7: #{_lambda_.3} parent=0 // pred_check_branch
    %12 = sbr.rel (0) target = $region9
  $region8: #{_lambda_.3} parent=0 // pred_region
    _
  $region9: #{_lambda_.3} parent=0 // pred_fallthru
    _
  // Predicated region
  $region10: #{_lambda_.3} parent=0 // pred_check
    _
  $region11: #{_lambda_.3} parent=0 // pred_check_branch
    %14 = sbr.rel (0) target = $region13
  $region12: #{_lambda_.3} parent=0 // pred_region
    _
  $region13: #{_lambda_.3} parent=0 // pred_fallthru
    _
  // Predicated region
  $region14: #{_lambda_.3} parent=0 // pred_check
    _
  $region15: #{_lambda_.3} parent=0 // pred_check_branch
    %16 = sbr.rel (0) target = $region17
  $region16: #{_lambda_.3} parent=0 // pred_region
    _
  $region17: #{_lambda_.3} parent=0 // pred_fallthru
    _
  %v17 = vld [vmem:[%s0] sm:$0xff]
  %v18 = vld [vmem:[%s0 + $0x8] sm:$0xff]
  %v19 = vld [vmem:[%s0 + $0x10] sm:$0xff]
  %v20 = vld [vmem:[%s0 + $0x18] sm:$0xff]
  %v21 = vld [vmem:[%s0 + $0x20] sm:$0xff]
  %v22 = vld [vmem:[%s0 + $0x28] sm:$0xff]
  %v23 = vld [vmem:[%s0 + $0x30] sm:$0xff]
  %v24 = vld [vmem:[%s0 + $0x38] sm:$0xff]
  %v25 = vld [vmem:[%s0 + $0x40] sm:$0xff]
  %v26 = vld [vmem:[%s0 + $0x48] sm:$0xff]
  %v27 = vld [vmem:[%s0 + $0x50] sm:$0xff]
  %v28 = vld [vmem:[%s0 + $0x58] sm:$0xff]
  %v29 = vld [vmem:[%s0 + $0x60] sm:$0xff]
  %v30 = vld [vmem:[%s0 + $0x68] sm:$0xff]
  %v31 = vld [vmem:[%s0 + $0x70] sm:$0xff]
  %v32 = vld [vmem:[%s0 + $0x78] sm:$0xff]
  %v33 = vld [vmem:[%s0 + $0x80] sm:$0xff]
  %v34 = vld [vmem:[%s0 + $0x88] sm:$0xff]
  %v35 = vld [vmem:[%s0 + $0x90] sm:$0xff]
  %v36 = vld [vmem:[%s0 + $0x98] sm:$0xff]
  %v37 = vld [vmem:[%s0 + $0xa0] sm:$0xff]
  %v38 = vld [vmem:[%s0 + $0xa8] sm:$0xff]
  %v39 = vld [vmem:[%s0 + $0xb0] sm:$0xff]
  %v40 = vld [vmem:[%s0 + $0xb8] sm:$0xff]
  %v41 = vld [vmem:[%s0 + $0xc0] sm:$0xff]
  %v42 = vld [vmem:[%s0 + $0xc8] sm:$0xff]
  %v43 = vld [vmem:[%s0 + $0xd0] sm:$0xff]
  %v44 = vld [vmem:[%s0 + $0xd8] sm:$0xff]
  %v45 = vld [vmem:[%s0 + $0xe0] sm:$0xff]
  %v46 = vld [vmem:[%s0 + $0xe8] sm:$0xff]
  %v47 = vld [vmem:[%s0 + $0xf0] sm:$0xff]
  %v48 = vld [vmem:[%s0 + $0xf8] sm:$0xff]
  %v49 = vld [vmem:[%s1] sm:$0xf]
  %v50 = vld [vmem:[%s1 + $0x4] sm:$0xf]
  %v51 = vld [vmem:[%s1 + $0x8] sm:$0xf]
  %v52 = vld [vmem:[%s1 + $0xc] sm:$0xf]
  %v53 = vld [vmem:[%s1 + $0x10] sm:$0xf]
  %v54 = vld [vmem:[%s1 + $0x14] sm:$0xf]
  %v55 = vld [vmem:[%s1 + $0x18] sm:$0xf]
  %v56 = vld [vmem:[%s1 + $0x1c] sm:$0xf]
  %v57 = vld [vmem:[%s1 + $0x20] sm:$0xf]
  %v58 = vld [vmem:[%s1 + $0x24] sm:$0xf]
  %v59 = vld [vmem:[%s1 + $0x28] sm:$0xf]
  %v60 = vld [vmem:[%s1 + $0x2c] sm:$0xf]
  %v61 = vld [vmem:[%s1 + $0x30] sm:$0xf]
  %v62 = vld [vmem:[%s1 + $0x34] sm:$0xf]
  %v63 = vld [vmem:[%s1 + $0x38] sm:$0xf]
  %v64 = vld [vmem:[%s1 + $0x3c] sm:$0xf]
  %v65 = vld [vmem:[%s1 + $0x40] sm:$0xf]
  %v66 = vld [vmem:[%s1 + $0x44] sm:$0xf]
  %v67 = vld [vmem:[%s1 + $0x48] sm:$0xf]
  %v68 = vld [vmem:[%s1 + $0x4c] sm:$0xf]
  %v69 = vld [vmem:[%s1 + $0x50] sm:$0xf]
  %v70 = vld [vmem:[%s1 + $0x54] sm:$0xf]
  %v71 = vld [vmem:[%s1 + $0x58] sm:$0xf]
  %v72 = vld [vmem:[%s1 + $0x5c] sm:$0xf]
  %v73 = vld [vmem:[%s1 + $0x60] sm:$0xf]
  %v74 = vld [vmem:[%s1 + $0x64] sm:$0xf]
  %v75 = vld [vmem:[%s1 + $0x68] sm:$0xf]
  %v76 = vld [vmem:[%s1 + $0x6c] sm:$0xf]
  %v77 = vld [vmem:[%s1 + $0x70] sm:$0xf]
  %v78 = vld [vmem:[%s1 + $0x74] sm:$0xf]
  %v79 = vld [vmem:[%s1 + $0x78] sm:$0xf]
  %v80 = vld [vmem:[%s1 + $0x7c] sm:$0xf]
  %v113 = vunpack.c.l.b16 %v17
  %v114 = vunpack.c.h.b16 %v17
  %v115 = vunpack.c.l.b16 %v18
  %v116 = vunpack.c.h.b16 %v18
  %v117 = vunpack.c.l.b16 %v19
  %v118 = vunpack.c.h.b16 %v19
  %v119 = vunpack.c.l.b16 %v20
  %v120 = vunpack.c.h.b16 %v20
  %v121 = vunpack.c.l.b16 %v21
  %v122 = vunpack.c.h.b16 %v21
  %v123 = vunpack.c.l.b16 %v22
  %v124 = vunpack.c.h.b16 %v22
  %v125 = vunpack.c.l.b16 %v23
  %v126 = vunpack.c.h.b16 %v23
  %v127 = vunpack.c.l.b16 %v24
  %v128 = vunpack.c.h.b16 %v24
  %v129 = vunpack.c.l.b16 %v25
  %v130 = vunpack.c.h.b16 %v25
  %v131 = vunpack.c.l.b16 %v26
  %v132 = vunpack.c.h.b16 %v26
  %v133 = vunpack.c.l.b16 %v27
  %v134 = vunpack.c.h.b16 %v27
  %v135 = vunpack.c.l.b16 %v28
  %v136 = vunpack.c.h.b16 %v28
  %v137 = vunpack.c.l.b16 %v29
  %v138 = vunpack.c.h.b16 %v29
  %v139 = vunpack.c.l.b16 %v30
  %v140 = vunpack.c.h.b16 %v30
  %v141 = vunpack.c.l.b16 %v31
  %v142 = vunpack.c.h.b16 %v31
  %v143 = vunpack.c.l.b16 %v32
  %v144 = vunpack.c.h.b16 %v32
  %v145 = vunpack.c.l.b16 %v33
  %v146 = vunpack.c.h.b16 %v33
  %v147 = vunpack.c.l.b16 %v34
  %v148 = vunpack.c.h.b16 %v34
  %v149 = vunpack.c.l.b16 %v35
  %v150 = vunpack.c.h.b16 %v35
  %v151 = vunpack.c.l.b16 %v36
  %v152 = vunpack.c.h.b16 %v36
  %v153 = vunpack.c.l.b16 %v37
  %v154 = vunpack.c.h.b16 %v37
  %v155 = vunpack.c.l.b16 %v38
  %v156 = vunpack.c.h.b16 %v38
  %v157 = vunpack.c.l.b16 %v39
  %v158 = vunpack.c.h.b16 %v39
  %v159 = vunpack.c.l.b16 %v40
  %v160 = vunpack.c.h.b16 %v40
  %v161 = vunpack.c.l.b16 %v41
  %v162 = vunpack.c.h.b16 %v41
  %v163 = vunpack.c.l.b16 %v42
  %v164 = vunpack.c.h.b16 %v42
  %v165 = vunpack.c.l.b16 %v43
  %v166 = vunpack.c.h.b16 %v43
  %v167 = vunpack.c.l.b16 %v44
  %v168 = vunpack.c.h.b16 %v44
  %v169 = vunpack.c.l.b16 %v45
  %v170 = vunpack.c.h.b16 %v45
  %v171 = vunpack.c.l.b16 %v46
  %v172 = vunpack.c.h.b16 %v46
  %v173 = vunpack.c.l.b16 %v47
  %v174 = vunpack.c.h.b16 %v47
  %v175 = vunpack.c.l.b16 %v48
  %v176 = vunpack.c.h.b16 %v48
  %v177 = vpack.c.b16 %v115, %v113
  %v178 = vpack.c.b16 %v116, %v114
  %v179 = vpack.c.b16 %v119, %v117
  %v180 = vpack.c.b16 %v120, %v118
  %v181 = vpack.c.b16 %v123, %v121
  %v182 = vpack.c.b16 %v124, %v122
  %v183 = vpack.c.b16 %v127, %v125
  %v184 = vpack.c.b16 %v128, %v126
  %v185 = vpack.c.b16 %v131, %v129
  %v186 = vpack.c.b16 %v132, %v130
  %v187 = vpack.c.b16 %v135, %v133
  %v188 = vpack.c.b16 %v136, %v134
  %v189 = vpack.c.b16 %v139, %v137
  %v190 = vpack.c.b16 %v140, %v138
  %v191 = vpack.c.b16 %v143, %v141
  %v192 = vpack.c.b16 %v144, %v142
  %v193 = vpack.c.b16 %v147, %v145
  %v194 = vpack.c.b16 %v148, %v146
  %v195 = vpack.c.b16 %v151, %v149
  %v196 = vpack.c.b16 %v152, %v150
  %v197 = vpack.c.b16 %v155, %v153
  %v198 = vpack.c.b16 %v156, %v154
  %v199 = vpack.c.b16 %v159, %v157
  %v200 = vpack.c.b16 %v160, %v158
  %v201 = vpack.c.b16 %v163, %v161
  %v202 = vpack.c.b16 %v164, %v162
  %v203 = vpack.c.b16 %v167, %v165
  %v204 = vpack.c.b16 %v168, %v166
  %v205 = vpack.c.b16 %v171, %v169
  %v206 = vpack.c.b16 %v172, %v170
  %v207 = vpack.c.b16 %v175, %v173
  %v208 = vpack.c.b16 %v176, %v174
  %v273 = vunpack.c.l.b16 %v49
  %v274 = vunpack.c.l.b16 %v50
  %v275 = vunpack.c.l.b16 %v51
  %v276 = vunpack.c.l.b16 %v52
  %v277 = vunpack.c.l.b16 %v53
  %v278 = vunpack.c.l.b16 %v54
  %v279 = vunpack.c.l.b16 %v55
  %v280 = vunpack.c.l.b16 %v56
  %v281 = vunpack.c.l.b16 %v57
  %v282 = vunpack.c.l.b16 %v58
  %v283 = vunpack.c.l.b16 %v59
  %v284 = vunpack.c.l.b16 %v60
  %v285 = vunpack.c.l.b16 %v61
  %v286 = vunpack.c.l.b16 %v62
  %v287 = vunpack.c.l.b16 %v63
  %v288 = vunpack.c.l.b16 %v64
  %v289 = vunpack.c.l.b16 %v65
  %v290 = vunpack.c.l.b16 %v66
  %v291 = vunpack.c.l.b16 %v67
  %v292 = vunpack.c.l.b16 %v68
  %v293 = vunpack.c.l.b16 %v69
  %v294 = vunpack.c.l.b16 %v70
  %v295 = vunpack.c.l.b16 %v71
  %v296 = vunpack.c.l.b16 %v72
  %v297 = vunpack.c.l.b16 %v73
  %v298 = vunpack.c.l.b16 %v74
  %v299 = vunpack.c.l.b16 %v75
  %v300 = vunpack.c.l.b16 %v76
  %v301 = vunpack.c.l.b16 %v77
  %v302 = vunpack.c.l.b16 %v78
  %v303 = vunpack.c.l.b16 %v79
  %v304 = vunpack.c.l.b16 %v80
  %v305 = vpack.c.b16 %v274, %v273
  %v306 = vpack.c.b16 %v276, %v275
  %v307 = vpack.c.b16 %v278, %v277
  %v308 = vpack.c.b16 %v280, %v279
  %v309 = vpack.c.b16 %v282, %v281
  %v310 = vpack.c.b16 %v284, %v283
  %v311 = vpack.c.b16 %v286, %v285
  %v312 = vpack.c.b16 %v288, %v287
  %v313 = vpack.c.b16 %v290, %v289
  %v314 = vpack.c.b16 %v292, %v291
  %v315 = vpack.c.b16 %v294, %v293
  %v316 = vpack.c.b16 %v296, %v295
  %v317 = vpack.c.b16 %v298, %v297
  %v318 = vpack.c.b16 %v300, %v299
  %v319 = vpack.c.b16 %v302, %v301
  %v320 = vpack.c.b16 %v304, %v303
  %337 = vmatpush.bf16.msra.mxu0 %v312
  %338 = vmatpush.bf16.msra.mxu0 %v311
  %339 = vmatpush.bf16.msra.mxu0 %v310
  %340 = vmatpush.bf16.msra.mxu0 %v309
  %341 = vmatpush.bf16.msra.mxu0 %v308
  %342 = vmatpush.bf16.msra.mxu0 %v307
  %343 = vmatpush.bf16.msra.mxu0 %v306
  %344 = vmatpush.bf16.msra.mxu0 %v305
  %345 = vmatmul.bf16.gmra.mxu0 %v177
  %v346 = vpop.f32.mrf.mxu0
  %v347 = vadd.f32 0.0, %v346
  %v348 = vpop.f32.mrf.mxu0
  %v349 = vadd.f32 0.0, %v348
  %350 = vmatmul.bf16.gmra.mxu0 %v179
  %v351 = vpop.f32.mrf.mxu0
  %v352 = vadd.f32 0.0, %v351
  %v353 = vpop.f32.mrf.mxu0
  %v354 = vadd.f32 0.0, %v353
  %355 = vmatmul.bf16.gmra.mxu0 %v181
  %v356 = vpop.f32.mrf.mxu0
  %v357 = vadd.f32 0.0, %v356
  %v358 = vpop.f32.mrf.mxu0
  %v359 = vadd.f32 0.0, %v358
  %360 = vmatmul.bf16.gmra.mxu0 %v183
  %v361 = vpop.f32.mrf.mxu0
  %v362 = vadd.f32 0.0, %v361
  %v363 = vpop.f32.mrf.mxu0
  %v364 = vadd.f32 0.0, %v363
  %365 = vmatmul.bf16.gmra.mxu0 %v185
  %v366 = vpop.f32.mrf.mxu0
  %v367 = vadd.f32 0.0, %v366
  %v368 = vpop.f32.mrf.mxu0
  %v369 = vadd.f32 0.0, %v368
  %370 = vmatmul.bf16.gmra.mxu0 %v187
  %v371 = vpop.f32.mrf.mxu0
  %v372 = vadd.f32 0.0, %v371
  %v373 = vpop.f32.mrf.mxu0
  %v374 = vadd.f32 0.0, %v373
  %375 = vmatmul.bf16.gmra.mxu0 %v189
  %v376 = vpop.f32.mrf.mxu0
  %v377 = vadd.f32 0.0, %v376
  %v378 = vpop.f32.mrf.mxu0
  %v379 = vadd.f32 0.0, %v378
  %380 = vmatmul.bf16.gmra.mxu0 %v191
  %v381 = vpop.f32.mrf.mxu0
  %v382 = vadd.f32 0.0, %v381
  %v383 = vpop.f32.mrf.mxu0
  %v384 = vadd.f32 0.0, %v383
  %385 = vmatmul.bf16.gmra.mxu0 %v193
  %v386 = vpop.f32.mrf.mxu0
  %v387 = vadd.f32 0.0, %v386
  %v388 = vpop.f32.mrf.mxu0
  %v389 = vadd.f32 0.0, %v388
  %390 = vmatmul.bf16.gmra.mxu0 %v195
  %v391 = vpop.f32.mrf.mxu0
  %v392 = vadd.f32 0.0, %v391
  %v393 = vpop.f32.mrf.mxu0
  %v394 = vadd.f32 0.0, %v393
  %395 = vmatmul.bf16.gmra.mxu0 %v197
  %v396 = vpop.f32.mrf.mxu0
  %v397 = vadd.f32 0.0, %v396
  %v398 = vpop.f32.mrf.mxu0
  %v399 = vadd.f32 0.0, %v398
  %400 = vmatmul.bf16.gmra.mxu0 %v199
  %v401 = vpop.f32.mrf.mxu0
  %v402 = vadd.f32 0.0, %v401
  %v403 = vpop.f32.mrf.mxu0
  %v404 = vadd.f32 0.0, %v403
  %405 = vmatmul.bf16.gmra.mxu0 %v201
  %v406 = vpop.f32.mrf.mxu0
  %v407 = vadd.f32 0.0, %v406
  %v408 = vpop.f32.mrf.mxu0
  %v409 = vadd.f32 0.0, %v408
  %410 = vmatmul.bf16.gmra.mxu0 %v203
  %v411 = vpop.f32.mrf.mxu0
  %v412 = vadd.f32 0.0, %v411
  %v413 = vpop.f32.mrf.mxu0
  %v414 = vadd.f32 0.0, %v413
  %415 = vmatmul.bf16.gmra.mxu0 %v205
  %v416 = vpop.f32.mrf.mxu0
  %v417 = vadd.f32 0.0, %v416
  %v418 = vpop.f32.mrf.mxu0
  %v419 = vadd.f32 0.0, %v418
  %420 = vmatmul.bf16.gmra.mxu0 %v207
  %v421 = vpop.f32.mrf.mxu0
  %v422 = vadd.f32 0.0, %v421
  %v423 = vpop.f32.mrf.mxu0
  %v424 = vadd.f32 0.0, %v423
  %425 = vdwg.mxu0
  %426 = vmatpush.bf16.msra.mxu0 %v320
  %427 = vmatpush.bf16.msra.mxu0 %v319
  %428 = vmatpush.bf16.msra.mxu0 %v318
  %429 = vmatpush.bf16.msra.mxu0 %v317
  %430 = vmatpush.bf16.msra.mxu0 %v316
  %431 = vmatpush.bf16.msra.mxu0 %v315
  %432 = vmatpush.bf16.msra.mxu0 %v314
  %433 = vmatpush.bf16.msra.mxu0 %v313
  %434 = vmatmul.bf16.gmra.mxu0 %v178
  %v435 = vpop.f32.mrf.mxu0
  %v436 = vadd.f32 %v347, %v435
  %v437 = vpop.f32.mrf.mxu0
  %v438 = vadd.f32 %v349, %v437
  %439 = vmatmul.bf16.gmra.mxu0 %v180
  %v440 = vpop.f32.mrf.mxu0
  %v441 = vadd.f32 %v352, %v440
  %v442 = vpop.f32.mrf.mxu0
  %v443 = vadd.f32 %v354, %v442
  %444 = vmatmul.bf16.gmra.mxu0 %v182
  %v445 = vpop.f32.mrf.mxu0
  %v446 = vadd.f32 %v357, %v445
  %v447 = vpop.f32.mrf.mxu0
  %v448 = vadd.f32 %v359, %v447
  %449 = vmatmul.bf16.gmra.mxu0 %v184
  %v450 = vpop.f32.mrf.mxu0
  %v451 = vadd.f32 %v362, %v450
  %v452 = vpop.f32.mrf.mxu0
  %v453 = vadd.f32 %v364, %v452
  %454 = vmatmul.bf16.gmra.mxu0 %v186
  %v455 = vpop.f32.mrf.mxu0
  %v456 = vadd.f32 %v367, %v455
  %v457 = vpop.f32.mrf.mxu0
  %v458 = vadd.f32 %v369, %v457
  %459 = vmatmul.bf16.gmra.mxu0 %v188
  %v460 = vpop.f32.mrf.mxu0
  %v461 = vadd.f32 %v372, %v460
  %v462 = vpop.f32.mrf.mxu0
  %v463 = vadd.f32 %v374, %v462
  %464 = vmatmul.bf16.gmra.mxu0 %v190
  %v465 = vpop.f32.mrf.mxu0
  %v466 = vadd.f32 %v377, %v465
  %v467 = vpop.f32.mrf.mxu0
  %v468 = vadd.f32 %v379, %v467
  %469 = vmatmul.bf16.gmra.mxu0 %v192
  %v470 = vpop.f32.mrf.mxu0
  %v471 = vadd.f32 %v382, %v470
  %v472 = vpop.f32.mrf.mxu0
  %v473 = vadd.f32 %v384, %v472
  %474 = vmatmul.bf16.gmra.mxu0 %v194
  %v475 = vpop.f32.mrf.mxu0
  %v476 = vadd.f32 %v387, %v475
  %v477 = vpop.f32.mrf.mxu0
  %v478 = vadd.f32 %v389, %v477
  %479 = vmatmul.bf16.gmra.mxu0 %v196
  %v480 = vpop.f32.mrf.mxu0
  %v481 = vadd.f32 %v392, %v480
  %v482 = vpop.f32.mrf.mxu0
  %v483 = vadd.f32 %v394, %v482
  %484 = vmatmul.bf16.gmra.mxu0 %v198
  %v485 = vpop.f32.mrf.mxu0
  %v486 = vadd.f32 %v397, %v485
  %v487 = vpop.f32.mrf.mxu0
  %v488 = vadd.f32 %v399, %v487
  %489 = vmatmul.bf16.gmra.mxu0 %v200
  %v490 = vpop.f32.mrf.mxu0
  %v491 = vadd.f32 %v402, %v490
  %v492 = vpop.f32.mrf.mxu0
  %v493 = vadd.f32 %v404, %v492
  %494 = vmatmul.bf16.gmra.mxu0 %v202
  %v495 = vpop.f32.mrf.mxu0
  %v496 = vadd.f32 %v407, %v495
  %v497 = vpop.f32.mrf.mxu0
  %v498 = vadd.f32 %v409, %v497
  %499 = vmatmul.bf16.gmra.mxu0 %v204
  %v500 = vpop.f32.mrf.mxu0
  %v501 = vadd.f32 %v412, %v500
  %v502 = vpop.f32.mrf.mxu0
  %v503 = vadd.f32 %v414, %v502
  %504 = vmatmul.bf16.gmra.mxu0 %v206
  %v505 = vpop.f32.mrf.mxu0
  %v506 = vadd.f32 %v417, %v505
  %v507 = vpop.f32.mrf.mxu0
  %v508 = vadd.f32 %v419, %v507
  %509 = vmatmul.bf16.gmra.mxu0 %v208
  %v510 = vpop.f32.mrf.mxu0
  %v511 = vadd.f32 %v422, %v510
  %v512 = vpop.f32.mrf.mxu0
  %v513 = vadd.f32 %v424, %v512
  %514 = vdwg.mxu0
  %v515 = vpack.c.bf16 %v438, %v436
  %v516 = vpack.c.bf16 %v443, %v441
  %v517 = vpack.c.bf16 %v448, %v446
  %v518 = vpack.c.bf16 %v453, %v451
  %v519 = vpack.c.bf16 %v458, %v456
  %v520 = vpack.c.bf16 %v463, %v461
  %v521 = vpack.c.bf16 %v468, %v466
  %v522 = vpack.c.bf16 %v473, %v471
  %v523 = vpack.c.bf16 %v478, %v476
  %v524 = vpack.c.bf16 %v483, %v481
  %v525 = vpack.c.bf16 %v488, %v486
  %v526 = vpack.c.bf16 %v493, %v491
  %v527 = vpack.c.bf16 %v498, %v496
  %v528 = vpack.c.bf16 %v503, %v501
  %v529 = vpack.c.bf16 %v508, %v506
  %v530 = vpack.c.bf16 %v513, %v511
  %v531 = vld [vmem:[%s2] sm:$0xf]
  %v532 = vld [vmem:[%s2 + $0x4] sm:$0xf]
  %v533 = vld [vmem:[%s2 + $0x8] sm:$0xf]
  %v534 = vld [vmem:[%s2 + $0xc] sm:$0xf]
  %v535 = vld [vmem:[%s2 + $0x10] sm:$0xf]
  %v536 = vld [vmem:[%s2 + $0x14] sm:$0xf]
  %v537 = vld [vmem:[%s2 + $0x18] sm:$0xf]
  %v538 = vld [vmem:[%s2 + $0x1c] sm:$0xf]
  %v539 = vld [vmem:[%s2 + $0x20] sm:$0xf]
  %v540 = vld [vmem:[%s2 + $0x24] sm:$0xf]
  %v541 = vld [vmem:[%s2 + $0x28] sm:$0xf]
  %v542 = vld [vmem:[%s2 + $0x2c] sm:$0xf]
  %v543 = vld [vmem:[%s2 + $0x30] sm:$0xf]
  %v544 = vld [vmem:[%s2 + $0x34] sm:$0xf]
  %v545 = vld [vmem:[%s2 + $0x38] sm:$0xf]
  %v546 = vld [vmem:[%s2 + $0x3c] sm:$0xf]
  %v547 = vld [vmem:[%s3] sm:$0x1]
  %v549 = vperm.slane %v547, 0
  %v567 = vunpack.c.l.b16 %v531
  %v568 = vunpack.c.l.b16 %v532
  %v569 = vunpack.c.l.b16 %v533
  %v570 = vunpack.c.l.b16 %v534
  %v571 = vunpack.c.l.b16 %v535
  %v572 = vunpack.c.l.b16 %v536
  %v573 = vunpack.c.l.b16 %v537
  %v574 = vunpack.c.l.b16 %v538
  %v575 = vunpack.c.l.b16 %v539
  %v576 = vunpack.c.l.b16 %v540
  %v577 = vunpack.c.l.b16 %v541
  %v578 = vunpack.c.l.b16 %v542
  %v579 = vunpack.c.l.b16 %v543
  %v580 = vunpack.c.l.b16 %v544
  %v581 = vunpack.c.l.b16 %v545
  %v582 = vunpack.c.l.b16 %v546
  %v583 = vpack.c.b16 %v568, %v567
  %v584 = vpack.c.b16 %v570, %v569
  %v585 = vpack.c.b16 %v572, %v571
  %v586 = vpack.c.b16 %v574, %v573
  %v587 = vpack.c.b16 %v576, %v575
  %v588 = vpack.c.b16 %v578, %v577
  %v589 = vpack.c.b16 %v580, %v579
  %v590 = vpack.c.b16 %v582, %v581
  %599 = vmatpush.bf16.msra.mxu0 %v590
  %600 = vmatpush.bf16.msra.mxu0 %v589
  %601 = vmatpush.bf16.msra.mxu0 %v588
  %602 = vmatpush.bf16.msra.mxu0 %v587
  %603 = vmatpush.bf16.msra.mxu0 %v586
  %604 = vmatpush.bf16.msra.mxu0 %v585
  %605 = vmatpush.bf16.msra.mxu0 %v584
  %606 = vmatpush.bf16.msra.mxu0 %v583
  %607 = vmatmul.bf16.gmra.mxu0 %v515
  %v608 = vpop.f32.mrf.mxu0
  %v609 = vadd.f32 %v549, %v608
  %v610 = vpop.f32.mrf.mxu0
  %v611 = vadd.f32 %v549, %v610
  %612 = vmatmul.bf16.gmra.mxu0 %v516
  %v613 = vpop.f32.mrf.mxu0
  %v614 = vadd.f32 %v549, %v613
  %v615 = vpop.f32.mrf.mxu0
  %v616 = vadd.f32 %v549, %v615
  %617 = vmatmul.bf16.gmra.mxu0 %v517
  %v618 = vpop.f32.mrf.mxu0
  %v619 = vadd.f32 %v549, %v618
  %v620 = vpop.f32.mrf.mxu0
  %v621 = vadd.f32 %v549, %v620
  %622 = vmatmul.bf16.gmra.mxu0 %v518
  %v623 = vpop.f32.mrf.mxu0
  %v624 = vadd.f32 %v549, %v623
  %v625 = vpop.f32.mrf.mxu0
  %v626 = vadd.f32 %v549, %v625
  %627 = vmatmul.bf16.gmra.mxu0 %v519
  %v628 = vpop.f32.mrf.mxu0
  %v629 = vadd.f32 %v549, %v628
  %v630 = vpop.f32.mrf.mxu0
  %v631 = vadd.f32 %v549, %v630
  %632 = vmatmul.bf16.gmra.mxu0 %v520
  %v633 = vpop.f32.mrf.mxu0
  %v634 = vadd.f32 %v549, %v633
  %v635 = vpop.f32.mrf.mxu0
  %v636 = vadd.f32 %v549, %v635
  %637 = vmatmul.bf16.gmra.mxu0 %v521
  %v638 = vpop.f32.mrf.mxu0
  %v639 = vadd.f32 %v549, %v638
  %v640 = vpop.f32.mrf.mxu0
  %v641 = vadd.f32 %v549, %v640
  %642 = vmatmul.bf16.gmra.mxu0 %v522
  %v643 = vpop.f32.mrf.mxu0
  %v644 = vadd.f32 %v549, %v643
  %v645 = vpop.f32.mrf.mxu0
  %v646 = vadd.f32 %v549, %v645
  %647 = vmatmul.bf16.gmra.mxu0 %v523
  %v648 = vpop.f32.mrf.mxu0
  %v649 = vadd.f32 %v549, %v648
  %v650 = vpop.f32.mrf.mxu0
  %v651 = vadd.f32 %v549, %v650
  %652 = vmatmul.bf16.gmra.mxu0 %v524
  %v653 = vpop.f32.mrf.mxu0
  %v654 = vadd.f32 %v549, %v653
  %v655 = vpop.f32.mrf.mxu0
  %v656 = vadd.f32 %v549, %v655
  %657 = vmatmul.bf16.gmra.mxu0 %v525
  %v658 = vpop.f32.mrf.mxu0
  %v659 = vadd.f32 %v549, %v658
  %v660 = vpop.f32.mrf.mxu0
  %v661 = vadd.f32 %v549, %v660
  %662 = vmatmul.bf16.gmra.mxu0 %v526
  %v663 = vpop.f32.mrf.mxu0
  %v664 = vadd.f32 %v549, %v663
  %v665 = vpop.f32.mrf.mxu0
  %v666 = vadd.f32 %v549, %v665
  %667 = vmatmul.bf16.gmra.mxu0 %v527
  %v668 = vpop.f32.mrf.mxu0
  %v669 = vadd.f32 %v549, %v668
  %v670 = vpop.f32.mrf.mxu0
  %v671 = vadd.f32 %v549, %v670
  %672 = vmatmul.bf16.gmra.mxu0 %v528
  %v673 = vpop.f32.mrf.mxu0
  %v674 = vadd.f32 %v549, %v673
  %v675 = vpop.f32.mrf.mxu0
  %v676 = vadd.f32 %v549, %v675
  %677 = vmatmul.bf16.gmra.mxu0 %v529
  %v678 = vpop.f32.mrf.mxu0
  %v679 = vadd.f32 %v549, %v678
  %v680 = vpop.f32.mrf.mxu0
  %v681 = vadd.f32 %v549, %v680
  %682 = vmatmul.bf16.gmra.mxu0 %v530
  %v683 = vpop.f32.mrf.mxu0
  %v684 = vadd.f32 %v549, %v683
  %v685 = vpop.f32.mrf.mxu0
  %v686 = vadd.f32 %v549, %v685
  %687 = vdwg.mxu0
  %v688 = vmax.f32 %v609, 0.0
  %v689 = vmax.f32 %v611, 0.0
  %v690 = vmax.f32 %v614, 0.0
  %v691 = vmax.f32 %v616, 0.0
  %v692 = vmax.f32 %v619, 0.0
  %v693 = vmax.f32 %v621, 0.0
  %v694 = vmax.f32 %v624, 0.0
  %v695 = vmax.f32 %v626, 0.0
  %v696 = vmax.f32 %v629, 0.0
  %v697 = vmax.f32 %v631, 0.0
  %v698 = vmax.f32 %v634, 0.0
  %v699 = vmax.f32 %v636, 0.0
  %v700 = vmax.f32 %v639, 0.0
  %v701 = vmax.f32 %v641, 0.0
  %v702 = vmax.f32 %v644, 0.0
  %v703 = vmax.f32 %v646, 0.0
  %v704 = vmax.f32 %v649, 0.0
  %v705 = vmax.f32 %v651, 0.0
  %v706 = vmax.f32 %v654, 0.0
  %v707 = vmax.f32 %v656, 0.0
  %v708 = vmax.f32 %v659, 0.0
  %v709 = vmax.f32 %v661, 0.0
  %v710 = vmax.f32 %v664, 0.0
  %v711 = vmax.f32 %v666, 0.0
  %v712 = vmax.f32 %v669, 0.0
  %v713 = vmax.f32 %v671, 0.0
  %v714 = vmax.f32 %v674, 0.0
  %v715 = vmax.f32 %v676, 0.0
  %v716 = vmax.f32 %v679, 0.0
  %v717 = vmax.f32 %v681, 0.0
  %v718 = vmax.f32 %v684, 0.0
  %v719 = vmax.f32 %v686, 0.0
  %v720 = vpack.c.bf16 %v688, %v688
  %v721 = vpack.c.bf16 %v689, %v689
  %v722 = vpack.c.bf16 %v690, %v690
  %v723 = vpack.c.bf16 %v691, %v691
  %v724 = vpack.c.bf16 %v692, %v692
  %v725 = vpack.c.bf16 %v693, %v693
  %v726 = vpack.c.bf16 %v694, %v694
  %v727 = vpack.c.bf16 %v695, %v695
  %v728 = vpack.c.bf16 %v696, %v696
  %v729 = vpack.c.bf16 %v697, %v697
  %v730 = vpack.c.bf16 %v698, %v698
  %v731 = vpack.c.bf16 %v699, %v699
  %v732 = vpack.c.bf16 %v700, %v700
  %v733 = vpack.c.bf16 %v701, %v701
  %v734 = vpack.c.bf16 %v702, %v702
  %v735 = vpack.c.bf16 %v703, %v703
  %v736 = vpack.c.bf16 %v704, %v704
  %v737 = vpack.c.bf16 %v705, %v705
  %v738 = vpack.c.bf16 %v706, %v706
  %v739 = vpack.c.bf16 %v707, %v707
  %v740 = vpack.c.bf16 %v708, %v708
  %v741 = vpack.c.bf16 %v709, %v709
  %v742 = vpack.c.bf16 %v710, %v710
  %v743 = vpack.c.bf16 %v711, %v711
  %v744 = vpack.c.bf16 %v712, %v712
  %v745 = vpack.c.bf16 %v713, %v713
  %v746 = vpack.c.bf16 %v714, %v714
  %v747 = vpack.c.bf16 %v715, %v715
  %v748 = vpack.c.bf16 %v716, %v716
  %v749 = vpack.c.bf16 %v717, %v717
  %v750 = vpack.c.bf16 %v718, %v718
  %v751 = vpack.c.bf16 %v719, %v719
  %752 = vst [vmem:[%s4] sm:$0xf] %v720
  %753 = vst [vmem:[%s4 + $0x4] sm:$0xf] %v721
  %754 = vst [vmem:[%s4 + $0x8] sm:$0xf] %v722
  %755 = vst [vmem:[%s4 + $0xc] sm:$0xf] %v723
  %756 = vst [vmem:[%s4 + $0x10] sm:$0xf] %v724
  %757 = vst [vmem:[%s4 + $0x14] sm:$0xf] %v725
  %758 = vst [vmem:[%s4 + $0x18] sm:$0xf] %v726
  %759 = vst [vmem:[%s4 + $0x1c] sm:$0xf] %v727
  %760 = vst [vmem:[%s4 + $0x20] sm:$0xf] %v728
  %761 = vst [vmem:[%s4 + $0x24] sm:$0xf] %v729
  %762 = vst [vmem:[%s4 + $0x28] sm:$0xf] %v730
  %763 = vst [vmem:[%s4 + $0x2c] sm:$0xf] %v731
  %764 = vst [vmem:[%s4 + $0x30] sm:$0xf] %v732
  %765 = vst [vmem:[%s4 + $0x34] sm:$0xf] %v733
  %766 = vst [vmem:[%s4 + $0x38] sm:$0xf] %v734
  %767 = vst [vmem:[%s4 + $0x3c] sm:$0xf] %v735
  %768 = vst [vmem:[%s4 + $0x40] sm:$0xf] %v736
  %769 = vst [vmem:[%s4 + $0x44] sm:$0xf] %v737
  %770 = vst [vmem:[%s4 + $0x48] sm:$0xf] %v738
  %771 = vst [vmem:[%s4 + $0x4c] sm:$0xf] %v739
  %772 = vst [vmem:[%s4 + $0x50] sm:$0xf] %v740
  %773 = vst [vmem:[%s4 + $0x54] sm:$0xf] %v741
  %774 = vst [vmem:[%s4 + $0x58] sm:$0xf] %v742
  %775 = vst [vmem:[%s4 + $0x5c] sm:$0xf] %v743
  %776 = vst [vmem:[%s4 + $0x60] sm:$0xf] %v744
  %777 = vst [vmem:[%s4 + $0x64] sm:$0xf] %v745
  %778 = vst [vmem:[%s4 + $0x68] sm:$0xf] %v746
  %779 = vst [vmem:[%s4 + $0x6c] sm:$0xf] %v747
  %780 = vst [vmem:[%s4 + $0x70] sm:$0xf] %v748
  %781 = vst [vmem:[%s4 + $0x74] sm:$0xf] %v749
  %782 = vst [vmem:[%s4 + $0x78] sm:$0xf] %v750
  %783 = vst [vmem:[%s4 + $0x7c] sm:$0xf] %v751
  // Predicated region
  $region18: #{_lambda_.3} parent=0 // pred_check
    _
  $region19: #{_lambda_.3} parent=0 // pred_check_branch
    %785 = sbr.rel (0) target = $region21
  $region20: #{_lambda_.3} parent=0 // pred_region
    _
  $region21: #{_lambda_.3} parent=0 // pred_fallthru
    _
  // Predicated region
  $region22: #{_lambda_.3} parent=0 // pred_check
    _
  $region23: #{_lambda_.3} parent=0 // pred_check_branch
    %787 = sbr.rel (0) target = $region25
  $region24: #{_lambda_.3} parent=0 // pred_region
    _
  $region25: #{_lambda_.3} parent=0 // pred_fallthru
    _

</llo_original>
